<compile_context>
chip_gen: v7x
topology: tpu7x:2x2x1
jax: 0.10.0
libtpu: 0.0.40
codegen_flags: <defaults>
</compile_context>

<pallas_src>
import functools

import jax
import jax.numpy as jnp
from jax import lax
from jax.experimental import pallas as pl
from jax.experimental.pallas import tpu as pltpu


# --------------------------------------------------------------------------- #
# Tiling helpers
# --------------------------------------------------------------------------- #
def _pick_tile(total, unit_bytes, budget_bytes, granule=8, min_tiles=1):
    """Pick a tile size along a dimension of length `total`.

    Returns the largest multiple-of-`granule` divisor `t` of `total` such that
    t * unit_bytes <= budget_bytes and total // t >= min_tiles.  Falls back to the
    full extent when `total` is not a multiple of `granule` (Mosaic requires block
    dims to be tile-aligned or equal to the full extent), and to `granule` when
    nothing fits the budget (the caller then bumps vmem_limit_bytes).
    """
    if total % granule != 0:
        # TODO(synk): remainder-masked tiles for non-aligned extents that overflow
        # the VMEM budget; for now take the full extent and rely on the explicit
        # vmem_limit_bytes bump.
        return total
    best = None
    t = granule
    while t <= total:
        if (total % t == 0 and t * unit_bytes <= budget_bytes
                and total // t >= min_tiles):
            best = t
        t += granule
    return best if best is not None else granule


def _maybe_vmem_limit(estimate_bytes):
    """Explicit scoped-VMEM limit only when the default (16/32 MiB) may be tight."""
    if estimate_bytes <= 12 * 1024 * 1024:
        return None
    # Cap at 40 MiB: leaves headroom on every generation (v7x has only 64 MiB of
    # physical VMEM; v5e/v6e have 128 MiB).
    return min(40 * 1024 * 1024, estimate_bytes + 8 * 1024 * 1024)


def _granule(itemsize):
    # Sub-32-bit dtypes pack along sublanes: 8 rows for 4B, 16 for 2B, 32 for 1B.
    return 8 * max(1, 4 // itemsize)


# --------------------------------------------------------------------------- #
# Path 1 (default): one-hot MXU matmul gather.
# --------------------------------------------------------------------------- #
def _onehot_gather_kernel(idx_ref, x_ref, o_ref, acc_ref, *, tn):
    # idx_ref: VMEM (tk, 1) int32    keep indices for this (batch, k-tile)
    # x_ref:   VMEM (tn, D)          source-token tile for this (batch, n-tile)
    # o_ref:   VMEM (tk, D)          output rows for this (batch, k-tile)
    # acc_ref: VMEM (tk, D) float32  accumulator (persists across the n axis)
    nt = pl.program_id(2)

    @pl.when(nt == 0)
    def _():
        acc_ref[...] = jnp.zeros_like(acc_ref)

    # one_hot[i, j] == 1  iff  keep-index i selects source token (nt * tn + j).
    tk = acc_ref.shape[0]
    pos = nt * tn + lax.broadcasted_iota(jnp.int32, (tk, tn), 1)
    one_hot = jnp.where(idx_ref[...] == pos, 1.0, 0.0).astype(x_ref.dtype)
    # Selection matmul: multiplies by exactly 1.0 / adds exactly 0.0, so the MXU
    # result (f32 accumulation) reproduces the gathered rows.
    acc_ref[...] += jnp.dot(one_hot, x_ref[...], preferred_element_type=jnp.float32)

    @pl.when(nt == pl.num_programs(2) - 1)
    def _():
        o_ref[...] = acc_ref[...].astype(o_ref.dtype)


def _onehot_gather(x, full_idx):
    B, N, D = x.shape
    k_out = full_idx.shape[1]
    itemsize = jnp.dtype(x.dtype).itemsize
    granule = _granule(itemsize)

    # k-tile: double-buffered output block + f32 accumulator per kept row.
    min_k_tiles = 2 if B == 1 else 1          # keep both v7x TensorCores busy
    tk = _pick_tile(k_out, D * (2 * itemsize + 4), 8 * 1024 * 1024,
                    granule, min_k_tiles)
    n_kt = k_out // tk
    # n-tile (reduction over source tokens): double-buffered x block.
    tn = _pick_tile(N, 2 * D * itemsize, 6 * 1024 * 1024, granule)
    n_nt = N // tn

    idx_col = full_idx.astype(jnp.int32)[:, :, None]      # (B, k_out, 1)

    est = 2 * tn * D * itemsize + tk * D * (2 * itemsize + 4) + 2 * 8 * 128 * 4
    kernel = functools.partial(_onehot_gather_kernel, tn=tn)

    return pl.pallas_call(
        kernel,
        out_shape=jax.ShapeDtypeStruct((B, k_out, D), x.dtype),
        grid_spec=pltpu.PrefetchScalarGridSpec(
            num_scalar_prefetch=0,
            grid=(B, n_kt, n_nt),
            in_specs=[
                pl.BlockSpec((None, tk, 1), lambda b, kt, nt: (b, kt, 0)),
                pl.BlockSpec((None, tn, D), lambda b, kt, nt: (b, nt, 0)),
            ],
            out_specs=pl.BlockSpec((None, tk, D), lambda b, kt, nt: (b, kt, 0)),
            scratch_shapes=[pltpu.VMEM((tk, D), jnp.float32)],
        ),
        compiler_params=pltpu.CompilerParams(
            dimension_semantics=("parallel", "parallel", "arbitrary"),
            vmem_limit_bytes=_maybe_vmem_limit(est),
        ),
    )(idx_col, x)


# --------------------------------------------------------------------------- #
# Path 2 (small keep fraction): per-row DMA gather; only kept rows leave HBM.
# --------------------------------------------------------------------------- #
def _dma_gather_kernel(idx_ref, x_hbm, o_ref, sem, *, k_out, tk, n_buf):
    # idx_ref: SMEM (B * k_out,) int32   flattened keep indices (cls folded in)
    # x_hbm:   HBM  (B, N, D)            source tokens (memory_space=pl.ANY)
    # o_ref:   VMEM (tk, D)              output rows for this (batch, k-tile)
    # sem:     DMA semaphore ring of depth n_buf
    b = pl.program_id(0)
    kt = pl.program_id(1)
    base = b * k_out + kt * tk

    def start_copy(k, row):
        pltpu.make_async_copy(
            x_hbm.at[b, pl.ds(row, 1), :],
            o_ref.at[pl.ds(k, 1), :],
            sem.at[k % n_buf],
        ).start()

    def wait_copy(k):
        # Only the destination shape and the semaphore matter for wait(); use a
        # fixed source row so no SMEM index load sits on the wait path.
        pltpu.make_async_copy(
            x_hbm.at[b, pl.ds(0, 1), :],
            o_ref.at[pl.ds(k, 1), :],
            sem.at[k % n_buf],
        ).wait()

    # Prime the ring with n_buf independent full-D row copies.
    @pl.loop(0, n_buf)
    def _(k):
        start_copy(k, idx_ref[base + k])

    # Steady state: branch-free; the next index is read before the wait so the
    # SMEM store->load forwarding is not broken by the DMA wait.
    @pl.loop(0, tk - n_buf)
    def _(k):
        row_next = idx_ref[base + k + n_buf]
        wait_copy(k)
        start_copy(k + n_buf, row_next)

    # Drain the remaining in-flight copies.
    @pl.loop(tk - n_buf, tk)
    def _(k):
        wait_copy(k)


def _dma_gather(x, full_idx):
    B, N, D = x.shape
    k_out = full_idx.shape[1]
    itemsize = jnp.dtype(x.dtype).itemsize
    row_bytes = D * itemsize
    granule = _granule(itemsize)

    min_k_tiles = 2 if B == 1 else 1
    tk = _pick_tile(k_out, 2 * row_bytes, 12 * 1024 * 1024, granule, min_k_tiles)
    n_kt = k_out // tk

    # Ring depth sized from the row byte count: deeper when rows are small so the
    # bandwidth x latency product stays covered.
    if row_bytes <= 4096:
        n_buf = 32
    elif row_bytes <= 16384:
        n_buf = 16
    else:
        n_buf = 8
    n_buf = max(1, min(n_buf, tk))

    idx_flat = full_idx.astype(jnp.int32).reshape(-1)      # 1-D SMEM layout

    est = 2 * tk * row_bytes + 4 * B * k_out
    kernel = functools.partial(_dma_gather_kernel, k_out=k_out, tk=tk, n_buf=n_buf)

    return pl.pallas_call(
        kernel,
        out_shape=jax.ShapeDtypeStruct((B, k_out, D), x.dtype),
        grid_spec=pltpu.PrefetchScalarGridSpec(
            num_scalar_prefetch=1,
            grid=(B, n_kt),
            in_specs=[pl.BlockSpec(memory_space=pl.ANY)],  # x stays in HBM
            out_specs=pl.BlockSpec((None, tk, D), lambda b, kt, idx: (b, kt, 0)),
            scratch_shapes=[pltpu.SemaphoreType.DMA((n_buf,))],
        ),
        compiler_params=pltpu.CompilerParams(
            dimension_semantics=("parallel", "parallel"),
            vmem_limit_bytes=_maybe_vmem_limit(est),
        ),
    )(idx_flat, x)


# --------------------------------------------------------------------------- #
# Public wrapper (PatchDropout.forward semantics)
# --------------------------------------------------------------------------- #
def patch_dropout(x, *, prob, key, training=True, exclude_first_token=True):
    """JAX/Pallas equivalent of PatchDropout.forward."""
    assert 0 <= prob < 1.0
    if (not training) or prob == 0.0:
        return x

    B, N, D = x.shape
    num_tokens = N - 1 if exclude_first_token else N
    keep_prob = 1.0 - prob
    num_keep = max(1, int(num_tokens * keep_prob))

    # rand = torch.randn(batch, num_tokens); topk(...).indices   (same semantics)
    rand = jax.random.normal(key, (B, num_tokens), dtype=jnp.float32)
    _, patch_indices_keep = lax.top_k(rand, num_keep)
    patch_indices_keep = patch_indices_keep.astype(jnp.int32)

    # Fold the cls token into the index table -> one uniform row gather.
    if exclude_first_token:
        full_idx = jnp.concatenate(
            [jnp.zeros((B, 1), jnp.int32), patch_indices_keep + 1], axis=1
        )
    else:
        full_idx = patch_indices_keep
    k_out = full_idx.shape[1]

    # Path selection: the one-hot MXU matmul reads all of x but at full HBM
    # bandwidth via a few large contiguous DMAs; the per-row DMA gather reads only
    # the kept rows but is descriptor-issue bound.  Prefer the matmul unless the
    # kept fraction is small enough (<= 1/4) that the extra read traffic dominates.
    # The DMA path also requires its flat index table to fit comfortably in SMEM.
    keep_frac = k_out / N
    smem_bytes = 4 * B * k_out
    if keep_frac <= 0.25 and smem_bytes <= 256 * 1024:
        return _dma_gather(x, full_idx)
    return _onehot_gather(x, full_idx)


if __name__ == "__main__":
    keys = jax.random.split(jax.random.PRNGKey(0), 8)

    # --- Test 1: cls token excluded (default) -> one-hot MXU matmul path ------
    B, N, D = 2, 9, 32          # 1 cls token + 8 patch tokens, hidden=32
    prob = 0.5                  # num_patches_keep = max(1, int(8 * 0.5)) = 4
    # bf16-representable f32 values so the one-hot matmul check is bit-exact
    # regardless of how the MXU emulates f32.
    x = jax.random.normal(keys[0], (B, N, D), dtype=jnp.float32)
    x = x.astype(jnp.bfloat16).astype(jnp.float32)

    out = patch_dropout(x, prob=prob, key=keys[1], training=True,
                        exclude_first_token=True)
    out = jax.block_until_ready(out)

    rand = jax.random.normal(keys[1], (B, N - 1), dtype=jnp.float32)
    _, idx = lax.top_k(rand, 4)
    ref = jnp.concatenate([x[:, :1], x[:, 1:][jnp.arange(B)[:, None], idx]], axis=1)
    assert out.shape == (B, 5, D), out.shape
    assert out.dtype == x.dtype
    assert jnp.allclose(out, ref), "mismatch (one-hot path, exclude_first_token=True)"

    # --- Test 2: exclude_first_token=False, bf16 -> one-hot MXU matmul path ---
    B2, N2, D2 = 2, 16, 128
    prob2 = 0.25                # keep = int(16 * 0.75) = 12
    x2 = jax.random.normal(keys[2], (B2, N2, D2),
                           dtype=jnp.float32).astype(jnp.bfloat16)

    out2 = patch_dropout(x2, prob=prob2, key=keys[3], training=True,
                         exclude_first_token=False)
    out2 = jax.block_until_ready(out2)

    rand2 = jax.random.normal(keys[3], (B2, N2), dtype=jnp.float32)
    _, idx2 = lax.top_k(rand2, 12)
    ref2 = x2[jnp.arange(B2)[:, None], idx2]
    assert out2.shape == (B2, 12, D2) and out2.dtype == jnp.bfloat16
    assert jnp.allclose(out2, ref2), "mismatch (one-hot path, full-token)"

    # --- Test 3: small keep fraction -> per-row DMA gather path ---------------
    B3, N3, D3 = 2, 65, 128
    prob3 = 0.875               # keep = int(64 * 0.125) = 8 (+ cls)
    x3 = jax.random.normal(keys[4], (B3, N3, D3), dtype=jnp.float32)

    out3 = patch_dropout(x3, prob=prob3, key=keys[5], training=True,
                         exclude_first_token=True)
    out3 = jax.block_until_ready(out3)

    rand3 = jax.random.normal(keys[5], (B3, N3 - 1), dtype=jnp.float32)
    _, idx3 = lax.top_k(rand3, 8)
    ref3 = jnp.concatenate([x3[:, :1], x3[:, 1:][jnp.arange(B3)[:, None], idx3]],
                           axis=1)
    assert out3.shape == (B3, 9, D3), out3.shape
    assert jnp.allclose(out3, ref3), "mismatch (DMA-gather path)"

    # --- Test 4: B == 1 -> k axis split in two (keeps both v7x cores busy) ----
    B4, N4, D4 = 1, 64, 128
    prob4 = 0.5                 # keep = 32 -> two k-tiles of 16 (bf16 granule)
    x4 = jax.random.normal(keys[6], (B4, N4, D4),
                           dtype=jnp.float32).astype(jnp.bfloat16)

    out4 = patch_dropout(x4, prob=prob4, key=keys[7], training=True,
                         exclude_first_token=False)
    out4 = jax.block_until_ready(out4)

    rand4 = jax.random.normal(keys[7], (B4, N4), dtype=jnp.float32)
    _, idx4 = lax.top_k(rand4, 32)
    ref4 = x4[jnp.arange(B4)[:, None], idx4]
    assert out4.shape == (B4, 32, D4), out4.shape
    assert jnp.allclose(out4, ref4), "mismatch (one-hot path, B == 1 k-tiled)"

    # Eval mode / prob == 0 shortcut returns x unchanged.
    assert patch_dropout(x, prob=prob, key=keys[1], training=False) is x

    print("KERNEL_OK")
</pallas_src>

<mosaic_0001>
module attributes {stable_mosaic.version = 11 : i64} {
  func.func @_onehot_gather_kernel(%arg0: i32, %arg1: i32, %arg2: i32, %arg3: memref<1x5x1xi32, #tpu.memory_space<vmem>>, %arg4: memref<1x9x32xf32, #tpu.memory_space<vmem>>, %arg5: memref<1x5x32xf32, #tpu.memory_space<vmem>>, %arg6: memref<5x32xf32, #tpu.memory_space<vmem>>) attributes {dimension_semantics = [#tpu.dimension_semantics<parallel>, #tpu.dimension_semantics<parallel>, #tpu.dimension_semantics<arbitrary>], iteration_bounds = array<i64: 2, 1, 1>, scalar_prefetch = 0 : i64, scratch_operands = 1 : i64, tpu.core_type = #tpu.core_type<tc>, window_params = [{transform_indices = @transform_0, window_bounds = array<i64: 1, 5, 1>}, {transform_indices = @transform_1, window_bounds = array<i64: 1, 9, 32>}, {transform_indices = @transform_2, window_bounds = array<i64: 1, 5, 32>}]} {
    %c0_i32 = arith.constant 0 : i32
    %0 = arith.cmpi eq, %arg2, %c0_i32 : i32
    %1 = arith.extui %0 : i1 to i32
    %c0_i32_0 = arith.constant 0 : i32
    %2 = arith.cmpi ne, %1, %c0_i32_0 : i32
    scf.if %2 {
      %cst_14 = arith.constant 0.000000e+00 : f32
      %23 = vector.broadcast %cst_14 : f32 to vector<5x32xf32>
      %c0_15 = arith.constant 0 : index
      %c0_16 = arith.constant 0 : index
      %24 = vector.load %arg6[%c0_15, %c0_16] : memref<5x32xf32, #tpu.memory_space<vmem>>, vector<5x32xf32>
      tpu.vector_store %arg6[%c0_15, %c0_16], %23 {strides = array<i32>} : memref<5x32xf32, #tpu.memory_space<vmem>>, vector<5x32xf32>,
    } else {
    }
    %c9_i32 = arith.constant 9 : i32
    %3 = arith.muli %arg2, %c9_i32 : i32
    %4 = tpu.iota {dimensions = array<i32: 1>} : vector<5x9xi32>
    %5 = vector.broadcast %3 : i32 to vector<5x9xi32>
    %6 = arith.addi %5, %4 : vector<5x9xi32>
    %c0 = arith.constant 0 : index
    %c0_1 = arith.constant 0 : index
    %c0_2 = arith.constant 0 : index
    %7 = vector.load %arg3[%c0, %c0_1, %c0_2] : memref<1x5x1xi32, #tpu.memory_space<vmem>>, vector<1x5x1xi32>
    %8 = vector.shape_cast %7 : vector<1x5x1xi32> to vector<5x1xi32>
    %9 = vector.broadcast %8 : vector<5x1xi32> to vector<5x9xi32>
    %10 = arith.cmpi eq, %9, %6 : vector<5x9xi32>
    %cst = arith.constant 1.000000e+00 : f32
    %cst_3 = arith.constant 0.000000e+00 : f32
    %11 = vector.broadcast %cst : f32 to vector<5x9xf32>
    %12 = vector.broadcast %cst_3 : f32 to vector<5x9xf32>
    %13 = arith.select %10, %11, %12 : vector<5x9xi1>, vector<5x9xf32>
    %c0_4 = arith.constant 0 : index
    %c0_5 = arith.constant 0 : index
    %14 = vector.load %arg6[%c0_4, %c0_5] : memref<5x32xf32, #tpu.memory_space<vmem>>, vector<5x32xf32>
    %c0_6 = arith.constant 0 : index
    %c0_7 = arith.constant 0 : index
    %c0_8 = arith.constant 0 : index
    %15 = vector.load %arg4[%c0_6, %c0_7, %c0_8] : memref<1x9x32xf32, #tpu.memory_space<vmem>>, vector<1x9x32xf32>
    %16 = vector.shape_cast %15 : vector<1x9x32xf32> to vector<9x32xf32>
    %cst_9 = arith.constant dense<0.000000e+00> : vector<5x32xf32>
    %17 = tpu.matmul %13, %16, %cst_9 {dimension_numbers = #tpu.dot_dimension_numbers<[1], [0], [0], [1], [0, 0, 1, 1], [], []>} : vector<5x9xf32>, vector<9x32xf32>, vector<5x32xf32> -> vector<5x32xf32>
    %18 = arith.addf %14, %17 : vector<5x32xf32>
    %c0_10 = arith.constant 0 : index
    %c0_11 = arith.constant 0 : index
    %19 = vector.load %arg6[%c0_10, %c0_11] : memref<5x32xf32, #tpu.memory_space<vmem>>, vector<5x32xf32>
    tpu.vector_store %arg6[%c0_10, %c0_11], %18 {strides = array<i32>} : memref<5x32xf32, #tpu.memory_space<vmem>>, vector<5x32xf32>,
    %c0_i32_12 = arith.constant 0 : i32
    %20 = arith.cmpi eq, %arg2, %c0_i32_12 : i32
    %21 = arith.extui %20 : i1 to i32
    %c0_i32_13 = arith.constant 0 : i32
    %22 = arith.cmpi ne, %21, %c0_i32_13 : i32
    scf.if %22 {
      %c0_14 = arith.constant 0 : index
      %c0_15 = arith.constant 0 : index
      %23 = vector.load %arg6[%c0_14, %c0_15] : memref<5x32xf32, #tpu.memory_space<vmem>>, vector<5x32xf32>
      %c0_16 = arith.constant 0 : index
      %c0_17 = arith.constant 0 : index
      %c0_18 = arith.constant 0 : index
      %24 = vector.load %arg5[%c0_16, %c0_17, %c0_18] : memref<1x5x32xf32, #tpu.memory_space<vmem>>, vector<1x5x32xf32>
      %25 = vector.shape_cast %24 : vector<1x5x32xf32> to vector<5x32xf32>
      %26 = vector.shape_cast %23 : vector<5x32xf32> to vector<1x5x32xf32>
      tpu.vector_store %arg5[%c0_16, %c0_17, %c0_18], %26 {strides = array<i32>} : memref<1x5x32xf32, #tpu.memory_space<vmem>>, vector<1x5x32xf32>,
    } else {
    }
    return
  }
  func.func @transform_0(%arg0: i32, %arg1: i32, %arg2: i32) -> (i32, i32, i32) {
    %c0_i32 = arith.constant 0 : i32
    %c0_i32_0 = arith.constant 0 : i32
    return %arg0, %arg1, %c0_i32 : i32, i32, i32
  }
  func.func @transform_1(%arg0: i32, %arg1: i32, %arg2: i32) -> (i32, i32, i32) {
    %c0_i32 = arith.constant 0 : i32
    %c0_i32_0 = arith.constant 0 : i32
    return %arg0, %arg2, %c0_i32 : i32, i32, i32
  }
  func.func @transform_2(%arg0: i32, %arg1: i32, %arg2: i32) -> (i32, i32, i32) {
    %c0_i32 = arith.constant 0 : i32
    %c0_i32_0 = arith.constant 0 : i32
    return %arg0, %arg1, %c0_i32 : i32, i32, i32
  }
}

</mosaic_0001>

<llo_original>
// kernel: tpu_custom_call.1
$region0: #{tpu_custom_call.1}
  #allocation0 [shape = 'u32[]', space=smem, size = 0x4, offset = 0x4, fixed_abs, tag = 'smem constant byte address 0x4 - core index']
  #allocation1 [shape = 'u32[144,128]{1,0:T(1,128)}', space=vmem, size = 0x12000, scoped, tag = 'internal scratch']
  #allocation2 [shape = 'f32[5,32]{1,0:T(8,128)}', space=vmem, size = 0x1000, scoped, tag = 'scratch operand']
  %s0 = inlined_call_operand.vmem [shape: s32[2,5,1], index: 0, kind: input, shape index: {}]
  %s1 = inlined_call_operand.vmem [shape: f32[2,9,32], index: 1, kind: input, shape index: {}]
  %s2 = inlined_call_operand.vmem [shape: f32[2,5,32], index: 2, kind: output, shape index: {}]
  %s3 = sld [smem:[#allocation0]]
  $region49: #{tpu_custom_call.1} parent=0
    _
  %s5 = ssub.s32 1, %s3
  %s6 = scalar_select 0, %s5, %s3
  loop: start=0, step=1, limit=4
  $region2: #{tpu_custom_call.1} parent=0 // loop_pre_header
    _
  $region3: #{tpu_custom_call.1} parent=0 // loop_header
    %s8 = sphi 0, %s12
    %p9 = scmp.ge.s32.totalorder %s8, 4
    %s15 = sphi 0, %s34
    %s16 = sphi 0, %s30
    %s17 = sphi 0, %s26
    %s18 = sphi 0, %s15
    %s19 = sphi 0, %s16
    %s20 = sphi 0, %s17
    %s21 = sphi 0, %s18
    %s22 = sphi 0, %s19
    %s23 = sphi 0, %s20
    %s39 = sphi 0, %s41
    %s42 = sphi 0, %s39
    %s43 = sphi 0, %s42
    %s59 = sphi 0, %s43
    %s67 = sphi 0, %s69
    %s70 = sphi 0, %s67
    %s71 = sphi 0, %s70
    %s87 = sphi 0, %s71
    %s95 = sphi 0, %s97
    %s98 = sphi 0, %s95
    %s99 = sphi 0, %s98
    %s115 = sphi 0, %s99
  $region4: #{tpu_custom_call.1} parent=0 // loop_header_branch
    %11 = sbr.rel (%p9) target = $region8
  $region5: #{tpu_custom_call.1} parent=0 // loop_body
    %s13 = ssub.s32 %s8, 1
    %s14 = ssub.s32 %s8, 2
    %s24 = sadd.s32 1, %s17
    %p25 = scmp.ge.s32.totalorder %s24, 1
    %s26 = scalar_select %p25, 0, %s24
    %s27 = sadd.s32 1, %s16
    %s28 = scalar_select %p25, %s27, %s16
    %p29 = scmp.ge.s32.totalorder %s28, 1
    %s30 = scalar_select %p29, 0, %s28
    %s31 = sadd.s32 1, %s15
    %s32 = scalar_select %p29, %s31, %s15
    %p33 = scmp.ge.s32.totalorder %s32, 2
    %s34 = scalar_select %p33, 0, %s32
    %s35 = ssub.s32 %s15, %s34
    %s36 = ssub.s32 %s16, %s30
    %s37 = sor.u32 %s35, %s36
    %p38 = scmp.eq.s32.totalorder %s37, 0
    %s40 = sadd.s32 %s39, 1
    %s41 = scalar_select %p38, %s39, %s40
    %p44 = pneg %p38
    %p45 = scmp.eq.s32.totalorder %s8, 1
    %p46 = por %p44, %p45
    %p47 = scmp.ne.s32.totalorder %s39, %s42
    %p48 = scmp.eq.s32.totalorder %s8, 0
    %p49 = por %p47, %p48
    %p50 = scmp.ne.s32.totalorder %s39, %s42
    %p51 = scmp.eq.s32.totalorder %s13, 1
    %p52 = por %p50, %p51
    %p53 = scmp.ne.s32.totalorder %s42, %s43
    %p54 = scmp.eq.s32.totalorder %s13, 0
    %p55 = por %p53, %p54
    %p56 = scmp.ne.s32.totalorder %s42, %s43
    %p57 = scmp.eq.s32.totalorder %s14, 1
    %p58 = por %p56, %p57
    %p60 = scmp.ne.s32.totalorder %s43, %s59
    %p61 = scmp.eq.s32.totalorder %s14, 0
    %p62 = por %p60, %p61
    %s63 = ssub.s32 %s15, %s34
    %s64 = ssub.s32 %s17, %s26
    %s65 = sor.u32 %s63, %s64
    %p66 = scmp.eq.s32.totalorder %s65, 0
    %s68 = sadd.s32 %s67, 1
    %s69 = scalar_select %p66, %s67, %s68
    %p72 = pneg %p66
    %p73 = scmp.eq.s32.totalorder %s8, 1
    %p74 = por %p72, %p73
    %p75 = scmp.ne.s32.totalorder %s67, %s70
    %p76 = scmp.eq.s32.totalorder %s8, 0
    %p77 = por %p75, %p76
    %p78 = scmp.ne.s32.totalorder %s67, %s70
    %p79 = scmp.eq.s32.totalorder %s13, 1
    %p80 = por %p78, %p79
    %p81 = scmp.ne.s32.totalorder %s70, %s71
    %p82 = scmp.eq.s32.totalorder %s13, 0
    %p83 = por %p81, %p82
    %p84 = scmp.ne.s32.totalorder %s70, %s71
    %p85 = scmp.eq.s32.totalorder %s14, 1
    %p86 = por %p84, %p85
    %p88 = scmp.ne.s32.totalorder %s71, %s87
    %p89 = scmp.eq.s32.totalorder %s14, 0
    %p90 = por %p88, %p89
    %s91 = ssub.s32 %s15, %s34
    %s92 = ssub.s32 %s16, %s30
    %s93 = sor.u32 %s91, %s92
    %p94 = scmp.eq.s32.totalorder %s93, 0
    %s96 = sadd.s32 %s95, 1
    %s97 = scalar_select %p94, %s95, %s96
    %p100 = pneg %p94
    %p101 = scmp.eq.s32.totalorder %s8, 1
    %p102 = por %p100, %p101
    %p103 = scmp.ne.s32.totalorder %s95, %s98
    %p104 = scmp.eq.s32.totalorder %s8, 0
    %p105 = por %p103, %p104
    %p106 = scmp.ne.s32.totalorder %s95, %s98
    %p107 = scmp.eq.s32.totalorder %s13, 1
    %p108 = por %p106, %p107
    %p109 = scmp.ne.s32.totalorder %s98, %s99
    %p110 = scmp.eq.s32.totalorder %s13, 0
    %p111 = por %p109, %p110
    %p112 = scmp.ne.s32.totalorder %s98, %s99
    %p113 = scmp.eq.s32.totalorder %s14, 1
    %p114 = por %p112, %p113
    %p116 = scmp.ne.s32.totalorder %s99, %s115
    %p117 = scmp.eq.s32.totalorder %s14, 0
    %p118 = por %p116, %p117
    %p119 = scmp.le.s32.totalorder 1, %s8
    %p120 = scmp.lt.s32.totalorder %s8, 3
    %p121 = pnand %p119, %p120
    %p122 = pneg %p121
    // Predicated region
    $region9: #{tpu_custom_call.1} parent=5 // pred_check
      _
    $region10: #{tpu_custom_call.1} parent=5 // pred_check_branch
      %124 = sbr.rel (%p121) target = $region12
    $region11: #{tpu_custom_call.1} parent=5 // pred_region
      %s125 = ssub.s32 %s8, 1
    $region12: #{tpu_custom_call.1} parent=5 // pred_fallthru
      _
    %p126 = scmp.lt.s32.totalorder %s8, 2
    // Predicated region
    $region13: #{tpu_custom_call.1} parent=5 // pred_check
      %p127 = pneg %p126
    $region14: #{tpu_custom_call.1} parent=5 // pred_check_branch
      %129 = sbr.rel (%p127) target = $region16
    $region15: #{tpu_custom_call.1} parent=5 // pred_region
      // Predicated region
      $region17: #{tpu_custom_call.1} parent=15 // pred_check
        %p130 = pneg %p49
      $region18: #{tpu_custom_call.1} parent=15 // pred_check_branch
        %132 = sbr.rel (%p130) target = $region20
      $region19: #{tpu_custom_call.1} parent=15 // pred_region
        %p133 = scmp.lt.s32.totalorder %s15, 1
        %s134 = scalar_select %p133, %s15, 1
        %p135 = scmp.lt.s32.totalorder %s16, 0
        %s136 = scalar_select %p135, %s16, 0
        %s137 = sadd.s32 %s136, %s134
        %s138 = smul.addr %s137, 8
        %s139 = scalar_lea.vmem %s0, %s138
      $region20: #{tpu_custom_call.1} parent=15 // pred_fallthru
        _
      // Predicated region
      $region21: #{tpu_custom_call.1} parent=15 // pred_check
        %p140 = pneg %p77
      $region22: #{tpu_custom_call.1} parent=15 // pred_check_branch
        %142 = sbr.rel (%p140) target = $region24
      $region23: #{tpu_custom_call.1} parent=15 // pred_region
        %s143 = smul.u32 2, %s17
        %p144 = scmp.lt.s32.totalorder %s15, 1
        %s145 = scalar_select %p144, %s15, 1
        %p146 = scmp.lt.s32.totalorder %s143, 1
        %s147 = scalar_select %p146, %s143, 1
        %s148 = smul.addr %s145, 2
        %s149 = sadd.s32 %s147, %s148
        %s150 = smul.addr %s149, 8
        %s151 = scalar_lea.vmem %s1, %s150
        %s152 = smul.u32 2, %s17
      $region24: #{tpu_custom_call.1} parent=15 // pred_fallthru
        _
    $region16: #{tpu_custom_call.1} parent=5 // pred_fallthru
      _
    %p153 = scmp.le.s32.totalorder 1, %s8
    %p154 = scmp.lt.s32.totalorder %s8, 3
    %p155 = pnand %p153, %p154
    %p156 = pneg %p155
    // Predicated region
    $region25: #{tpu_custom_call.1} parent=5 // pred_check
      _
    $region26: #{tpu_custom_call.1} parent=5 // pred_check_branch
      %158 = sbr.rel (%p155) target = $region28
    $region27: #{tpu_custom_call.1} parent=5 // pred_region
      %s159 = ssub.s32 %s8, 1
      %p160 = scmp.lt.s32.totalorder %s18, 1
      %s161 = scalar_select %p160, %s18, 1
      %p162 = scmp.lt.s32.totalorder %s19, 0
      %s163 = scalar_select %p162, %s19, 0
      %s164 = sadd.s32 %s163, %s161
      %s165 = smul.addr %s164, 8
      %s166 = scalar_lea.vmem %s0, %s165
      %p167 = pneg %p55
      %p168 = pneg %p52
      %s169 = smul.u32 2, %s20
      %p170 = scmp.lt.s32.totalorder %s18, 1
      %s171 = scalar_select %p170, %s18, 1
      %p172 = scmp.lt.s32.totalorder %s169, 1
      %s173 = scalar_select %p172, %s169, 1
      %s174 = smul.addr %s171, 2
      %s175 = sadd.s32 %s173, %s174
      %s176 = smul.addr %s175, 8
      %s177 = scalar_lea.vmem %s1, %s176
      %p178 = pneg %p83
      %p179 = pneg %p80
      %p180 = pneg %p111
      %p181 = pneg %p108
      %p182 = scmp.lt.s32.totalorder %s18, 1
      %s183 = scalar_select %p182, %s18, 1
      %p184 = scmp.lt.s32.totalorder %s19, 0
      %s185 = scalar_select %p184, %s19, 0
      %s186 = sadd.s32 %s185, %s183
      %s187 = smul.addr %s186, 8
      %s188 = scalar_lea.vmem %s2, %s187
      %p189 = scmp.lt.s32.totalorder %s18, 1
      %s190 = scalar_select %p189, %s18, 1
      %p191 = scmp.lt.s32.totalorder %s19, 0
      %s192 = scalar_select %p191, %s19, 0
      %s193 = sadd.s32 %s192, %s190
      %s194 = smul.addr %s193, 8
      %s195 = scalar_lea.vmem %s0, %s194
      %s196 = smul.u32 2, %s20
      %p197 = scmp.lt.s32.totalorder %s18, 1
      %s198 = scalar_select %p197, %s18, 1
      %p199 = scmp.lt.s32.totalorder %s196, 1
      %s200 = scalar_select %p199, %s196, 1
      %s201 = smul.addr %s198, 2
      %s202 = sadd.s32 %s200, %s201
      %s203 = smul.addr %s202, 8
      %s204 = scalar_lea.vmem %s1, %s203
      %s205 = smul.u32 2, %s20
      %p206 = scmp.lt.s32.totalorder %s18, 1
      %s207 = scalar_select %p206, %s18, 1
      %p208 = scmp.lt.s32.totalorder %s19, 0
      %s209 = scalar_select %p208, %s19, 0
      %s210 = sadd.s32 %s209, %s207
      %s211 = smul.addr %s210, 8
      %s212 = scalar_lea.vmem %s2, %s211
      %p213 = scmp.eq.s32.totalorder %s20, 0
      // Predicated region
      $region29: #{tpu_custom_call.1} parent=27 // pred_check
        %p214 = pneg %p213
      $region30: #{tpu_custom_call.1} parent=27 // pred_check_branch
        %216 = sbr.rel (%p214) target = $region32
      $region31: #{tpu_custom_call.1} parent=27 // pred_region
        %vm217 = vcmask 258048
        %218 = vst.msk [vmem:[#allocation2] sm:$0x1f] %vm217, 0.0
      $region32: #{tpu_custom_call.1} parent=27 // pred_fallthru
        _
      %s219 = smul.u32 %s20, 9
      %v220 = vlaneseq
      %v221 = vand.u32 %v220, 127
      %v222 = vstv %s219
      %v223 = vadd.s32 %v222, %v221
      %v224 = vld [vmem:[%s195] sm:$0x1f]
      %225 = vset.pattern.permute.xlu0 0
      %226 = vperm.xlu0 %225, %v224
      %v227 = vpop.permute.xlu0 %226
      %vm228 = vcmp.eq.s32.totalorder %v227, %v223
      %v229 = vsel %vm228, 1.0, 0.0
      %v230 = vld [vmem:[#allocation2] sm:$0x1f]
      %v231 = vld [vmem:[%s204] sm:$0xff]
      %v232 = vld [vmem:[%s204 + $0x8] sm:$0x1]
      %vm233 = vcmask 72704
      %v235 = vsel %vm233, %v229, 0
      %vm237 = vcmask 1040384
      %v239 = vsel %vm237, %v232, 0
      %241 = vmatprep.subr.mxu0 0.0
      %242 = vmatpush1.msra.mxu0 %v231
      %243 = vmatprep.subr.mxu0 0.0
      %244 = vmatpush1.msra.mxu0 %v239
      %245 = vmatprep.subr.mxu0 0.0
      %246 = vmatpush1.msra.mxu0 0.0
      %247 = vmatprep.subr.mxu0 0.0
      %248 = vmatpush1.msra.mxu0 0.0
      %249 = vmatprep.subr.mxu0 0.0
      %250 = vmatpush1.msra.mxu0 0.0
      %251 = vmatprep.subr.mxu0 0.0
      %252 = vmatpush1.msra.mxu0 0.0
      %253 = vmatprep.subr.mxu0 0.0
      %254 = vmatpush1.msra.mxu0 0.0
      %255 = vmatprep.subr.mxu0 0.0
      %256 = vmatpush1.msra.mxu0 0.0
      %257 = vmatprep.subr.mxu0 0.0
      %258 = vmatpush1.msra.mxu0 0.0
      %259 = vmatprep.subr.mxu0 0.0
      %260 = vmatpush1.msra.mxu0 0.0
      %261 = vmatprep.subr.mxu0 0.0
      %262 = vmatpush1.msra.mxu0 0.0
      %263 = vmatprep.subr.mxu0 0.0
      %264 = vmatpush1.msra.mxu0 0.0
      %265 = vmatprep.subr.mxu0 0.0
      %266 = vmatpush1.msra.mxu0 0.0
      %267 = vmatprep.subr.mxu0 0.0
      %268 = vmatpush1.msra.mxu0 0.0
      %269 = vmatprep.subr.mxu0 0.0
      %270 = vmatpush1.msra.mxu0 0.0
      %271 = vmatprep.subr.mxu0 0.0
      %272 = vmatpush1.msra.mxu0 0.0
      %273 = vmatprep.subr.mxu0 0.0
      %274 = vmatpush1.msra.mxu0 0.0
      %275 = vmatprep.subr.mxu0 0.0
      %276 = vmatpush1.msra.mxu0 0.0
      %277 = vmatprep.subr.mxu0 0.0
      %278 = vmatpush1.msra.mxu0 0.0
      %279 = vmatprep.subr.mxu0 0.0
      %280 = vmatpush1.msra.mxu0 0.0
      %281 = vmatprep.subr.mxu0 0.0
      %282 = vmatpush1.msra.mxu0 0.0
      %283 = vmatprep.subr.mxu0 0.0
      %284 = vmatpush1.msra.mxu0 0.0
      %285 = vmatprep.subr.mxu0 0.0
      %286 = vmatpush1.msra.mxu0 0.0
      %287 = vmatprep.subr.mxu0 0.0
      %288 = vmatpush1.msra.mxu0 0.0
      %289 = vmatprep.subr.mxu0 0.0
      %290 = vmatpush1.msra.mxu0 0.0
      %291 = vmatprep.subr.mxu0 0.0
      %292 = vmatpush1.msra.mxu0 0.0
      %293 = vmatprep.subr.mxu0 0.0
      %294 = vmatpush1.msra.mxu0 0.0
      %295 = vmatprep.subr.mxu0 0.0
      %296 = vmatpush1.msra.mxu0 0.0
      %297 = vmatprep.subr.mxu0 0.0
      %298 = vmatpush1.msra.mxu0 0.0
      %299 = vmatprep.subr.mxu0 0.0
      %300 = vmatpush1.msra.mxu0 0.0
      %301 = vmatprep.subr.mxu0 0.0
      %302 = vmatpush1.msra.mxu0 0.0
      %303 = vmatprep.subr.mxu0 0.0
      %304 = vmatpush1.msra.mxu0 0.0
      %305 = vmatprep.mubr.f32.mxu0 0.0
      %306 = vmatmul.mubr.f32.gmra.mrb[0].mxu0 %v235
      %v307 = vpop.f32.mrb[0].mxu0
      %v308 = vadd.f32 0.0, %v307
      %v309 = vpop.f32.mrb[0].mxu0
      %310 = vdwg.mxu0
      %v311 = vadd.f32 %v230, %v308
      %vm312 = vcmask 258048
      %313 = vst.msk [vmem:[#allocation2] sm:$0x1f] %vm312, %v311
      // Predicated region
      $region33: #{tpu_custom_call.1} parent=27 // pred_check
        %p314 = pneg %p213
      $region34: #{tpu_custom_call.1} parent=27 // pred_check_branch
        %316 = sbr.rel (%p314) target = $region36
      $region35: #{tpu_custom_call.1} parent=27 // pred_region
        %v317 = vld [vmem:[#allocation2] sm:$0x1f]
        %318 = vst.msk [vmem:[%s212] sm:$0x1f] %vm312, %v317
      $region36: #{tpu_custom_call.1} parent=27 // pred_fallthru
        _
      %p319 = scmp.lt.s32.totalorder %s18, 1
      %s320 = scalar_select %p319, %s18, 1
      %p321 = scmp.lt.s32.totalorder %s19, 0
      %s322 = scalar_select %p321, %s19, 0
      %s323 = sadd.s32 %s322, %s320
      %s324 = smul.addr %s323, 8
      %s325 = scalar_lea.vmem %s2, %s324
      // Predicated region
      $region37: #{tpu_custom_call.1} parent=27 // pred_check
        %p326 = pneg %p108
      $region38: #{tpu_custom_call.1} parent=27 // pred_check_branch
        %328 = sbr.rel (%p326) target = $region40
      $region39: #{tpu_custom_call.1} parent=27 // pred_region
        _
      $region40: #{tpu_custom_call.1} parent=27 // pred_fallthru
        _
    $region28: #{tpu_custom_call.1} parent=5 // pred_fallthru
      _
    %p329 = scmp.le.s32.totalorder 2, %s8
    // Predicated region
    $region41: #{tpu_custom_call.1} parent=5 // pred_check
      %p330 = pneg %p329
    $region42: #{tpu_custom_call.1} parent=5 // pred_check_branch
      %332 = sbr.rel (%p330) target = $region44
    $region43: #{tpu_custom_call.1} parent=5 // pred_region
      %s333 = ssub.s32 %s8, 2
      // Predicated region
      $region45: #{tpu_custom_call.1} parent=43 // pred_check
        %p334 = pneg %p114
      $region46: #{tpu_custom_call.1} parent=43 // pred_check_branch
        %336 = sbr.rel (%p334) target = $region48
      $region47: #{tpu_custom_call.1} parent=43 // pred_region
        %p337 = scmp.lt.s32.totalorder %s21, 1
        %s338 = scalar_select %p337, %s21, 1
        %p339 = scmp.lt.s32.totalorder %s22, 0
        %s340 = scalar_select %p339, %s22, 0
        %s341 = sadd.s32 %s340, %s338
        %s342 = smul.addr %s341, 8
        %s343 = scalar_lea.vmem %s2, %s342
      $region48: #{tpu_custom_call.1} parent=43 // pred_fallthru
        _
    $region44: #{tpu_custom_call.1} parent=5 // pred_fallthru
      _
  $region6: #{tpu_custom_call.1} parent=0 // loop_footer
    %s12 = sadd.s32 1, %s8
  $region7: #{tpu_custom_call.1} parent=0 // loop_footer_branch
    %7 = sbr.rel target = $region3
  $region8: #{tpu_custom_call.1} parent=0 // loop_exit
    _

</llo_original>
